<compile_context>
chip_gen: v6e
topology: v6e:2x2x1
jax: 0.10.0
libtpu: 0.0.40
codegen_flags: <defaults>
</compile_context>

<pallas_src>
import math

import jax
import jax.numpy as jnp
from jax import lax
from jax.experimental import pallas as pl
from jax.experimental.pallas import tpu as pltpu


def _prod(shape):
    p = 1
    for s in shape:
        p *= int(s)
    return p


def _round_up(x, m):
    return ((x + m - 1) // m) * m


def _cdiv(a, b):
    return (a + b - 1) // b


def _gelu_exact(x):
    # nn.GELU() default = exact erf-based GELU (kept exact to preserve module semantics).
    return 0.5 * x * (1.0 + lax.erf(x * (1.0 / math.sqrt(2.0))))


def decoder_block_kernel(x_ref, w1_ref, b1_ref, w2_ref, b2_ref, w3_ref, b3_ref, o_ref):
    cdt = w1_ref.dtype  # compute dtype for MXU operands (bf16 by default)

    x = x_ref[...]
    # Linear(d_in -> d_ff): low-precision operands, f32 accumulate.
    h1 = jnp.dot(x, w1_ref[...], preferred_element_type=jnp.float32) + b1_ref[...]
    # Linear(d_ff -> d_ff)
    h2 = jnp.dot(h1.astype(cdt), w2_ref[...], preferred_element_type=jnp.float32) + b2_ref[...]
    # Dropout(p=0.1): identity in eval mode.
    # GELU (exact, erf-based), computed in f32 (goes to the EUP slot).
    g = _gelu_exact(h2)
    # Linear(d_ff -> d_input)
    out = jnp.dot(g.astype(cdt), w3_ref[...], preferred_element_type=jnp.float32) + b3_ref[...]

    o_ref[...] = out.astype(o_ref.dtype)


def prepare_params(params, compute_dtype=jnp.bfloat16):
    """One-time preprocessing: pad feature dims to multiples of 128 (lane-dense, full MXU
    columns) and cast weights to the MXU compute dtype. Do this ONCE, outside the hot path."""
    w1, b1, w2, b2, w3, b3 = params
    d_in, d_ff = int(w1.shape[0]), int(w1.shape[1])
    d_input = int(w3.shape[1])

    d_in_p = _round_up(d_in, 128)
    d_ff_p = _round_up(d_ff, 128)
    d_out_p = _round_up(d_input, 128)

    def pad2(a, rp, cp):
        a = jnp.asarray(a)
        r, c = a.shape
        if rp != r or cp != c:
            a = jnp.pad(a, ((0, rp - r), (0, cp - c)))
        return a

    w1p = pad2(w1, d_in_p, d_ff_p).astype(compute_dtype)
    w2p = pad2(w2, d_ff_p, d_ff_p).astype(compute_dtype)
    w3p = pad2(w3, d_ff_p, d_out_p).astype(compute_dtype)
    b1p = pad2(jnp.asarray(b1).reshape(1, d_ff), 1, d_ff_p).astype(jnp.float32)
    b2p = pad2(jnp.asarray(b2).reshape(1, d_ff), 1, d_ff_p).astype(jnp.float32)
    b3p = pad2(jnp.asarray(b3).reshape(1, d_input), 1, d_out_p).astype(jnp.float32)

    dims = dict(d_in=d_in, d_ff=d_ff, d_input=d_input,
                d_in_p=d_in_p, d_ff_p=d_ff_p, d_out_p=d_out_p)
    return (w1p, b1p, w2p, b2p, w3p, b3p), dims


def _vmem_ceiling_bytes():
    """7/8 of physical VMEM: ~56 MiB on v7x (64 MiB), ~112 MiB on v5e/v6e (128 MiB)."""
    try:
        cap = int(pltpu.get_tpu_info().vmem_capacity_bytes)
    except Exception:
        cap = 64 * 1024 * 1024
    return max(32 * 1024 * 1024, (cap * 7) // 8)


def decoder_block_forward(x, prepared_params, dims, *, tm=512, compute_dtype=jnp.bfloat16):
    """x: [..., d_in] -> [..., d_input].  `prepared_params`/`dims` come from prepare_params()."""
    w1p, b1p, w2p, b2p, w3p, b3p = prepared_params
    d_in, d_input = dims["d_in"], dims["d_input"]
    d_in_p, d_ff_p, d_out_p = dims["d_in_p"], dims["d_ff_p"], dims["d_out_p"]

    lead_shape = x.shape[:-1]
    M = _prod(lead_shape)
    out_dtype = x.dtype

    # --- Row tiling -------------------------------------------------------------------
    # Sublane packing for the compute dtype.
    sub = 16 if jnp.dtype(compute_dtype) == jnp.dtype(jnp.bfloat16) else 8
    tm_req = max(sub, (int(tm) // sub) * sub)
    mp0 = _round_up(max(M, 1), sub)
    # Guarantee >= 2 grid steps when there is more than one sublane group, so the
    # "parallel" axis can shard across both TensorCores on v7x.
    if mp0 > sub:
        tm_req = min(tm_req, _round_up(_cdiv(mp0, 2), sub))
    # Balanced tiles: no pad-to-tile blow-up for awkward M.
    grid_m = _cdiv(mp0, tm_req)
    tm_eff = _round_up(_cdiv(mp0, grid_m), sub)
    mp = tm_eff * grid_m
    grid = (grid_m,)

    # --- Activation pad/cast (skipped when already aligned) ----------------------------
    x2 = x.reshape(M, d_in)
    if x2.dtype != jnp.dtype(compute_dtype):
        x2 = x2.astype(compute_dtype)
    if mp != M or d_in_p != d_in:
        x2 = jnp.pad(x2, ((0, mp - M), (0, d_in_p - d_in)))

    # --- VMEM budget --------------------------------------------------------------------
    cbytes = jnp.dtype(compute_dtype).itemsize
    obytes = jnp.dtype(out_dtype).itemsize
    weight_bytes = (
        (d_in_p * d_ff_p + d_ff_p * d_ff_p + d_ff_p * d_out_p) * cbytes
        + (2 * d_ff_p + d_out_p) * 4
    )
    need = (
        2 * tm_eff * d_in_p * cbytes        # x tiles (double-buffered)
        + 2 * tm_eff * d_out_p * obytes     # out tiles (double-buffered)
        + weight_bytes                      # resident weights/biases (single-buffered)
        + 4 * tm_eff * d_ff_p * 4           # f32 intermediates (h1, h2, g) + slack
    )
    vmem_limit = int(min(_vmem_ceiling_bytes(), max(32 * 1024 * 1024, 2 * need)))

    cost = pl.CostEstimate(
        flops=2 * mp * (d_in_p * d_ff_p + d_ff_p * d_ff_p + d_ff_p * d_out_p),
        transcendentals=mp * d_ff_p,  # erf in the GELU
        bytes_accessed=int(mp * d_in_p * cbytes + weight_bytes + mp * d_out_p * obytes),
    )

    def build_call(weight_pipeline_mode):
        wkw = {} if weight_pipeline_mode is None else dict(pipeline_mode=weight_pipeline_mode)
        return pl.pallas_call(
            decoder_block_kernel,
            out_shape=jax.ShapeDtypeStruct((mp, d_out_p), out_dtype),
            grid_spec=pltpu.PrefetchScalarGridSpec(
                num_scalar_prefetch=0,
                grid=grid,
                in_specs=[
                    pl.BlockSpec((tm_eff, d_in_p), lambda i: (i, 0)),          # x rows
                    pl.BlockSpec((d_in_p, d_ff_p), lambda i: (0, 0), **wkw),   # W1 (resident)
                    pl.BlockSpec((1, d_ff_p), lambda i: (0, 0), **wkw),        # b1
                    pl.BlockSpec((d_ff_p, d_ff_p), lambda i: (0, 0), **wkw),   # W2 (resident)
                    pl.BlockSpec((1, d_ff_p), lambda i: (0, 0), **wkw),        # b2
                    pl.BlockSpec((d_ff_p, d_out_p), lambda i: (0, 0), **wkw),  # W3 (resident)
                    pl.BlockSpec((1, d_out_p), lambda i: (0, 0), **wkw),       # b3
                ],
                out_specs=pl.BlockSpec((tm_eff, d_out_p), lambda i: (i, 0)),
            ),
            compiler_params=pltpu.CompilerParams(
                dimension_semantics=("parallel",),
                vmem_limit_bytes=vmem_limit,
            ),
            cost_estimate=cost,
        )

    args = (x2, w1p, b1p, w2p, b2p, w3p, b3p)
    try:
        # Constant-index weight blocks: a second pipeline buffer is never filled, so request
        # single buffering and halve the weight VMEM footprint.
        out = build_call(pl.Buffered(1))(*args)
    except Exception:
        # Fallback for jax versions / lowerings that reject Buffered(1) on inputs.
        out = build_call(None)(*args)

    return out[:M, :d_input].reshape(*lead_shape, d_input)


def init_params(key, d_ff, d_in, d_input, dtype=jnp.float32):
    """Deterministic init mimicking nn.Linear defaults (uniform +/- 1/sqrt(fan_in)).
    Weights stored as [in, out] (== PyTorch W.T)."""
    ks = jax.random.split(key, 6)

    def lin(kw, kb, fan_in, fan_out):
        bound = 1.0 / math.sqrt(fan_in)
        w = jax.random.uniform(kw, (fan_in, fan_out), dtype, -bound, bound)
        b = jax.random.uniform(kb, (1, fan_out), dtype, -bound, bound)
        return w, b

    w1, b1 = lin(ks[0], ks[1], d_in, d_ff)
    w2, b2 = lin(ks[2], ks[3], d_ff, d_ff)
    w3, b3 = lin(ks[4], ks[5], d_ff, d_input)
    return (w1, b1, w2, b2, w3, b3)


def reference_forward(x, params, compute_dtype=None):
    """Pure-JAX reference (eval-mode dropout = identity).
    If compute_dtype is set, mimics the kernel's low-precision-operand / f32-accumulate math."""
    w1, b1, w2, b2, w3, b3 = params
    cast = (lambda a: a) if compute_dtype is None else (lambda a: a.astype(compute_dtype))
    h1 = jnp.dot(cast(x), cast(w1), preferred_element_type=jnp.float32) + b1
    h2 = jnp.dot(cast(h1), cast(w2), preferred_element_type=jnp.float32) + b2
    g = _gelu_exact(h2)
    return jnp.dot(cast(g), cast(w3), preferred_element_type=jnp.float32) + b3


if __name__ == "__main__":
    # Small shapes consistent with the module: batch=2, seq=8, d_in=32, d_ff=64, d_input=32.
    B, S = 2, 8
    d_in, d_ff, d_input = 32, 64, 32

    key = jax.random.PRNGKey(0)
    kx, kp = jax.random.split(key)

    x = jax.random.normal(kx, (B, S, d_in), jnp.float32)
    params = init_params(kp, d_ff, d_in, d_input)

    # One-time weight preprocessing (pad to 128 multiples + bf16 cast), out of the hot path.
    prepared, dims = prepare_params(params, compute_dtype=jnp.bfloat16)
    prepared = jax.block_until_ready(prepared)

    out = decoder_block_forward(x, prepared, dims, tm=512, compute_dtype=jnp.bfloat16)
    out = jax.block_until_ready(out)
    assert out.shape == (B, S, d_input), out.shape

    x2 = x.reshape(-1, d_in)

    # Tight check against a reference using the same bf16-operand / f32-accumulate math.
    ref_bf16 = reference_forward(x2, params, compute_dtype=jnp.bfloat16).reshape(B, S, d_input)
    err_bf16 = float(jnp.max(jnp.abs(out - ref_bf16)))
    assert jnp.allclose(out, ref_bf16, atol=2e-2, rtol=2e-2), err_bf16

    # Semantics check against the full-f32 (PyTorch-equivalent) math: only bf16 quantisation noise.
    ref_f32 = reference_forward(x2, params).reshape(B, S, d_input)
    err_f32 = float(jnp.max(jnp.abs(out - ref_f32)))
    assert jnp.allclose(out, ref_f32, atol=6e-2, rtol=6e-2), err_f32

    print("KERNEL_OK")
</pallas_src>

<mosaic_0001>
module attributes {stable_mosaic.version = 11 : i64} {
  func.func @decoder_block_kernel(%arg0: i32, %arg1: memref<16x128xbf16, #tpu.memory_space<vmem>>, %arg2: memref<128x128xbf16, #tpu.memory_space<vmem>>, %arg3: memref<1x128xf32, #tpu.memory_space<vmem>>, %arg4: memref<128x128xbf16, #tpu.memory_space<vmem>>, %arg5: memref<1x128xf32, #tpu.memory_space<vmem>>, %arg6: memref<128x128xbf16, #tpu.memory_space<vmem>>, %arg7: memref<1x128xf32, #tpu.memory_space<vmem>>, %arg8: memref<16x128xf32, #tpu.memory_space<vmem>>) attributes {dimension_semantics = [#tpu.dimension_semantics<parallel>], iteration_bounds = array<i64: 1>, scalar_prefetch = 0 : i64, scratch_operands = 0 : i64, tpu.core_type = #tpu.core_type<tc>, window_params = [{transform_indices = @transform_0, window_bounds = array<i64: 16, 128>}, {pipeline_mode = #tpu.pipeline_mode<synchronous>, transform_indices = @transform_1, window_bounds = array<i64: 128, 128>}, {pipeline_mode = #tpu.pipeline_mode<synchronous>, transform_indices = @transform_2, window_bounds = array<i64: 1, 128>}, {pipeline_mode = #tpu.pipeline_mode<synchronous>, transform_indices = @transform_3, window_bounds = array<i64: 128, 128>}, {pipeline_mode = #tpu.pipeline_mode<synchronous>, transform_indices = @transform_4, window_bounds = array<i64: 1, 128>}, {pipeline_mode = #tpu.pipeline_mode<synchronous>, transform_indices = @transform_5, window_bounds = array<i64: 128, 128>}, {pipeline_mode = #tpu.pipeline_mode<synchronous>, transform_indices = @transform_6, window_bounds = array<i64: 1, 128>}, {transform_indices = @transform_7, window_bounds = array<i64: 16, 128>}]} {
    %c0 = arith.constant 0 : index
    %c0_0 = arith.constant 0 : index
    %0 = vector.load %arg1[%c0, %c0_0] : memref<16x128xbf16, #tpu.memory_space<vmem>>, vector<16x128xbf16>
    %c0_1 = arith.constant 0 : index
    %c0_2 = arith.constant 0 : index
    %1 = vector.load %arg2[%c0_1, %c0_2] : memref<128x128xbf16, #tpu.memory_space<vmem>>, vector<128x128xbf16>
    %cst = arith.constant dense<0.000000e+00> : vector<16x128xf32>
    %2 = tpu.matmul %0, %1, %cst {dimension_numbers = #tpu.dot_dimension_numbers<[1], [0], [0], [1], [0, 0, 1, 1], [], []>} : vector<16x128xbf16>, vector<128x128xbf16>, vector<16x128xf32> -> vector<16x128xf32>
    %c0_3 = arith.constant 0 : index
    %c0_4 = arith.constant 0 : index
    %3 = vector.load %arg3[%c0_3, %c0_4] : memref<1x128xf32, #tpu.memory_space<vmem>>, vector<1x128xf32>
    %4 = vector.broadcast %3 : vector<1x128xf32> to vector<16x128xf32>
    %5 = arith.addf %2, %4 : vector<16x128xf32>
    %6 = arith.truncf %5 : vector<16x128xf32> to vector<16x128xbf16>
    %c0_5 = arith.constant 0 : index
    %c0_6 = arith.constant 0 : index
    %7 = vector.load %arg4[%c0_5, %c0_6] : memref<128x128xbf16, #tpu.memory_space<vmem>>, vector<128x128xbf16>
    %cst_7 = arith.constant dense<0.000000e+00> : vector<16x128xf32>
    %8 = tpu.matmul %6, %7, %cst_7 {dimension_numbers = #tpu.dot_dimension_numbers<[1], [0], [0], [1], [0, 0, 1, 1], [], []>} : vector<16x128xbf16>, vector<128x128xbf16>, vector<16x128xf32> -> vector<16x128xf32>
    %c0_8 = arith.constant 0 : index
    %c0_9 = arith.constant 0 : index
    %9 = vector.load %arg5[%c0_8, %c0_9] : memref<1x128xf32, #tpu.memory_space<vmem>>, vector<1x128xf32>
    %10 = vector.broadcast %9 : vector<1x128xf32> to vector<16x128xf32>
    %11 = arith.addf %8, %10 : vector<16x128xf32>
    %cst_10 = arith.constant 5.000000e-01 : f32
    %12 = vector.broadcast %cst_10 : f32 to vector<16x128xf32>
    %13 = arith.mulf %12, %11 : vector<16x128xf32>
    %cst_11 = arith.constant 0.707106769 : f32
    %14 = vector.broadcast %cst_11 : f32 to vector<16x128xf32>
    %15 = arith.mulf %11, %14 : vector<16x128xf32>
    %16 = math.erf %15 : vector<16x128xf32>
    %cst_12 = arith.constant 1.000000e+00 : f32
    %17 = vector.broadcast %cst_12 : f32 to vector<16x128xf32>
    %18 = arith.addf %17, %16 : vector<16x128xf32>
    %19 = arith.mulf %13, %18 : vector<16x128xf32>
    %20 = arith.truncf %19 : vector<16x128xf32> to vector<16x128xbf16>
    %c0_13 = arith.constant 0 : index
    %c0_14 = arith.constant 0 : index
    %21 = vector.load %arg6[%c0_13, %c0_14] : memref<128x128xbf16, #tpu.memory_space<vmem>>, vector<128x128xbf16>
    %cst_15 = arith.constant dense<0.000000e+00> : vector<16x128xf32>
    %22 = tpu.matmul %20, %21, %cst_15 {dimension_numbers = #tpu.dot_dimension_numbers<[1], [0], [0], [1], [0, 0, 1, 1], [], []>} : vector<16x128xbf16>, vector<128x128xbf16>, vector<16x128xf32> -> vector<16x128xf32>
    %c0_16 = arith.constant 0 : index
    %c0_17 = arith.constant 0 : index
    %23 = vector.load %arg7[%c0_16, %c0_17] : memref<1x128xf32, #tpu.memory_space<vmem>>, vector<1x128xf32>
    %24 = vector.broadcast %23 : vector<1x128xf32> to vector<16x128xf32>
    %25 = arith.addf %22, %24 : vector<16x128xf32>
    %c0_18 = arith.constant 0 : index
    %c0_19 = arith.constant 0 : index
    %26 = vector.load %arg8[%c0_18, %c0_19] : memref<16x128xf32, #tpu.memory_space<vmem>>, vector<16x128xf32>
    tpu.vector_store %arg8[%c0_18, %c0_19], %25 {strides = array<i32>} : memref<16x128xf32, #tpu.memory_space<vmem>>, vector<16x128xf32>,
    return
  }
  func.func @transform_0(%arg0: i32) -> (i32, i32) {
    %c0_i32 = arith.constant 0 : i32
    %c0_i32_0 = arith.constant 0 : i32
    return %arg0, %c0_i32 : i32, i32
  }
  func.func @transform_1(%arg0: i32) -> (i32, i32) {
    %c0_i32 = arith.constant 0 : i32
    %c0_i32_0 = arith.constant 0 : i32
    %c0_i32_1 = arith.constant 0 : i32
    return %c0_i32, %c0_i32_0 : i32, i32
  }
  func.func @transform_2(%arg0: i32) -> (i32, i32) {
    %c0_i32 = arith.constant 0 : i32
    %c0_i32_0 = arith.constant 0 : i32
    %c0_i32_1 = arith.constant 0 : i32
    return %c0_i32, %c0_i32_0 : i32, i32
  }
  func.func @transform_3(%arg0: i32) -> (i32, i32) {
    %c0_i32 = arith.constant 0 : i32
    %c0_i32_0 = arith.constant 0 : i32
    %c0_i32_1 = arith.constant 0 : i32
    return %c0_i32, %c0_i32_0 : i32, i32
  }
  func.func @transform_4(%arg0: i32) -> (i32, i32) {
    %c0_i32 = arith.constant 0 : i32
    %c0_i32_0 = arith.constant 0 : i32
    %c0_i32_1 = arith.constant 0 : i32
    return %c0_i32, %c0_i32_0 : i32, i32
  }
  func.func @transform_5(%arg0: i32) -> (i32, i32) {
    %c0_i32 = arith.constant 0 : i32
    %c0_i32_0 = arith.constant 0 : i32
    %c0_i32_1 = arith.constant 0 : i32
    return %c0_i32, %c0_i32_0 : i32, i32
  }
  func.func @transform_6(%arg0: i32) -> (i32, i32) {
    %c0_i32 = arith.constant 0 : i32
    %c0_i32_0 = arith.constant 0 : i32
    %c0_i32_1 = arith.constant 0 : i32
    return %c0_i32, %c0_i32_0 : i32, i32
  }
  func.func @transform_7(%arg0: i32) -> (i32, i32) {
    %c0_i32 = arith.constant 0 : i32
    %c0_i32_0 = arith.constant 0 : i32
    return %arg0, %c0_i32 : i32, i32
  }
}

module attributes {stable_mosaic.version = 11 : i64} {
  func.func @decoder_block_kernel(%arg0: i32, %arg1: memref<16x128xbf16, #tpu.memory_space<vmem>>, %arg2: memref<128x128xbf16, #tpu.memory_space<vmem>>, %arg3: memref<1x128xf32, #tpu.memory_space<vmem>>, %arg4: memref<128x128xbf16, #tpu.memory_space<vmem>>, %arg5: memref<1x128xf32, #tpu.memory_space<vmem>>, %arg6: memref<128x128xbf16, #tpu.memory_space<vmem>>, %arg7: memref<1x128xf32, #tpu.memory_space<vmem>>, %arg8: memref<16x128xf32, #tpu.memory_space<vmem>>) attributes {dimension_semantics = [#tpu.dimension_semantics<parallel>], iteration_bounds = array<i64: 1>, scalar_prefetch = 0 : i64, scratch_operands = 0 : i64, tpu.core_type = #tpu.core_type<tc>, window_params = [{transform_indices = @transform_0, window_bounds = array<i64: 16, 128>}, {pipeline_mode = #tpu.pipeline_mode<synchronous>, transform_indices = @transform_1, window_bounds = array<i64: 128, 128>}, {pipeline_mode = #tpu.pipeline_mode<synchronous>, transform_indices = @transform_2, window_bounds = array<i64: 1, 128>}, {pipeline_mode = #tpu.pipeline_mode<synchronous>, transform_indices = @transform_3, window_bounds = array<i64: 128, 128>}, {pipeline_mode = #tpu.pipeline_mode<synchronous>, transform_indices = @transform_4, window_bounds = array<i64: 1, 128>}, {pipeline_mode = #tpu.pipeline_mode<synchronous>, transform_indices = @transform_5, window_bounds = array<i64: 128, 128>}, {pipeline_mode = #tpu.pipeline_mode<synchronous>, transform_indices = @transform_6, window_bounds = array<i64: 1, 128>}, {transform_indices = @transform_7, window_bounds = array<i64: 16, 128>}]} {
    %c0 = arith.constant 0 : index
    %c0_0 = arith.constant 0 : index
    %0 = vector.load %arg1[%c0, %c0_0] : memref<16x128xbf16, #tpu.memory_space<vmem>>, vector<16x128xbf16>
    %c0_1 = arith.constant 0 : index
    %c0_2 = arith.constant 0 : index
    %1 = vector.load %arg2[%c0_1, %c0_2] : memref<128x128xbf16, #tpu.memory_space<vmem>>, vector<128x128xbf16>
    %cst = arith.constant dense<0.000000e+00> : vector<16x128xf32>
    %2 = tpu.matmul %0, %1, %cst {dimension_numbers = #tpu.dot_dimension_numbers<[1], [0], [0], [1], [0, 0, 1, 1], [], []>} : vector<16x128xbf16>, vector<128x128xbf16>, vector<16x128xf32> -> vector<16x128xf32>
    %c0_3 = arith.constant 0 : index
    %c0_4 = arith.constant 0 : index
    %3 = vector.load %arg3[%c0_3, %c0_4] : memref<1x128xf32, #tpu.memory_space<vmem>>, vector<1x128xf32>
    %4 = vector.broadcast %3 : vector<1x128xf32> to vector<16x128xf32>
    %5 = arith.addf %2, %4 : vector<16x128xf32>
    %6 = arith.truncf %5 : vector<16x128xf32> to vector<16x128xbf16>
    %c0_5 = arith.constant 0 : index
    %c0_6 = arith.constant 0 : index
    %7 = vector.load %arg4[%c0_5, %c0_6] : memref<128x128xbf16, #tpu.memory_space<vmem>>, vector<128x128xbf16>
    %cst_7 = arith.constant dense<0.000000e+00> : vector<16x128xf32>
    %8 = tpu.matmul %6, %7, %cst_7 {dimension_numbers = #tpu.dot_dimension_numbers<[1], [0], [0], [1], [0, 0, 1, 1], [], []>} : vector<16x128xbf16>, vector<128x128xbf16>, vector<16x128xf32> -> vector<16x128xf32>
    %c0_8 = arith.constant 0 : index
    %c0_9 = arith.constant 0 : index
    %9 = vector.load %arg5[%c0_8, %c0_9] : memref<1x128xf32, #tpu.memory_space<vmem>>, vector<1x128xf32>
    %10 = vector.broadcast %9 : vector<1x128xf32> to vector<16x128xf32>
    %11 = arith.addf %8, %10 : vector<16x128xf32>
    %cst_10 = arith.constant 5.000000e-01 : f32
    %12 = vector.broadcast %cst_10 : f32 to vector<16x128xf32>
    %13 = arith.mulf %12, %11 : vector<16x128xf32>
    %cst_11 = arith.constant 0.707106769 : f32
    %14 = vector.broadcast %cst_11 : f32 to vector<16x128xf32>
    %15 = arith.mulf %11, %14 : vector<16x128xf32>
    %16 = math.erf %15 : vector<16x128xf32>
    %cst_12 = arith.constant 1.000000e+00 : f32
    %17 = vector.broadcast %cst_12 : f32 to vector<16x128xf32>
    %18 = arith.addf %17, %16 : vector<16x128xf32>
    %19 = arith.mulf %13, %18 : vector<16x128xf32>
    %20 = arith.truncf %19 : vector<16x128xf32> to vector<16x128xbf16>
    %c0_13 = arith.constant 0 : index
    %c0_14 = arith.constant 0 : index
    %21 = vector.load %arg6[%c0_13, %c0_14] : memref<128x128xbf16, #tpu.memory_space<vmem>>, vector<128x128xbf16>
    %cst_15 = arith.constant dense<0.000000e+00> : vector<16x128xf32>
    %22 = tpu.matmul %20, %21, %cst_15 {dimension_numbers = #tpu.dot_dimension_numbers<[1], [0], [0], [1], [0, 0, 1, 1], [], []>} : vector<16x128xbf16>, vector<128x128xbf16>, vector<16x128xf32> -> vector<16x128xf32>
    %c0_16 = arith.constant 0 : index
    %c0_17 = arith.constant 0 : index
    %23 = vector.load %arg7[%c0_16, %c0_17] : memref<1x128xf32, #tpu.memory_space<vmem>>, vector<1x128xf32>
    %24 = vector.broadcast %23 : vector<1x128xf32> to vector<16x128xf32>
    %25 = arith.addf %22, %24 : vector<16x128xf32>
    %c0_18 = arith.constant 0 : index
    %c0_19 = arith.constant 0 : index
    %26 = vector.load %arg8[%c0_18, %c0_19] : memref<16x128xf32, #tpu.memory_space<vmem>>, vector<16x128xf32>
    tpu.vector_store %arg8[%c0_18, %c0_19], %25 {strides = array<i32>} : memref<16x128xf32, #tpu.memory_space<vmem>>, vector<16x128xf32>,
    return
  }
  func.func @transform_0(%arg0: i32) -> (i32, i32) {
    %c0_i32 = arith.constant 0 : i32
    %c0_i32_0 = arith.constant 0 : i32
    return %arg0, %c0_i32 : i32, i32
  }
  func.func @transform_1(%arg0: i32) -> (i32, i32) {
    %c0_i32 = arith.constant 0 : i32
    %c0_i32_0 = arith.constant 0 : i32
    %c0_i32_1 = arith.constant 0 : i32
    return %c0_i32, %c0_i32_0 : i32, i32
  }
  func.func @transform_2(%arg0: i32) -> (i32, i32) {
    %c0_i32 = arith.constant 0 : i32
    %c0_i32_0 = arith.constant 0 : i32
    %c0_i32_1 = arith.constant 0 : i32
    return %c0_i32, %c0_i32_0 : i32, i32
  }
  func.func @transform_3(%arg0: i32) -> (i32, i32) {
    %c0_i32 = arith.constant 0 : i32
    %c0_i32_0 = arith.constant 0 : i32
    %c0_i32_1 = arith.constant 0 : i32
    return %c0_i32, %c0_i32_0 : i32, i32
  }
  func.func @transform_4(%arg0: i32) -> (i32, i32) {
    %c0_i32 = arith.constant 0 : i32
    %c0_i32_0 = arith.constant 0 : i32
    %c0_i32_1 = arith.constant 0 : i32
    return %c0_i32, %c0_i32_0 : i32, i32
  }
  func.func @transform_5(%arg0: i32) -> (i32, i32) {
    %c0_i32 = arith.constant 0 : i32
    %c0_i32_0 = arith.constant 0 : i32
    %c0_i32_1 = arith.constant 0 : i32
    return %c0_i32, %c0_i32_0 : i32, i32
  }
  func.func @transform_6(%arg0: i32) -> (i32, i32) {
    %c0_i32 = arith.constant 0 : i32
    %c0_i32_0 = arith.constant 0 : i32
    %c0_i32_1 = arith.constant 0 : i32
    return %c0_i32, %c0_i32_0 : i32, i32
  }
  func.func @transform_7(%arg0: i32) -> (i32, i32) {
    %c0_i32 = arith.constant 0 : i32
    %c0_i32_0 = arith.constant 0 : i32
    return %arg0, %c0_i32 : i32, i32
  }
}

</mosaic_0001>

<llo_original>
// kernel: tpu_custom_call.1
$region0: #{tpu_custom_call.1}
  #allocation0 [shape = 'u32[]', space=smem, size = 0x4, offset = 0x4, fixed_abs, tag = 'smem constant byte address 0x4 - core index']
  #allocation1 [shape = 'u32[144,128]{1,0:T(1,128)}', space=vmem, size = 0x12000, scoped, tag = 'internal scratch']
  %s0 = inlined_call_operand.hbm [shape: bf16[16,128], index: 0, kind: input, shape index: {}]
  %s1 = inlined_call_operand.hbm [shape: bf16[128,128], index: 1, kind: input, shape index: {}]
  %s2 = inlined_call_operand.vmem [shape: f32[1,128], index: 2, kind: input, shape index: {}]
  %s3 = inlined_call_operand.hbm [shape: bf16[128,128], index: 3, kind: input, shape index: {}]
  %s4 = inlined_call_operand.vmem [shape: f32[1,128], index: 4, kind: input, shape index: {}]
  %s5 = inlined_call_operand.hbm [shape: bf16[128,128], index: 5, kind: input, shape index: {}]
  %s6 = inlined_call_operand.vmem [shape: f32[1,128], index: 6, kind: input, shape index: {}]
  %s7 = inlined_call_operand.hbm [shape: f32[16,128], index: 7, kind: output, shape index: {}]
  %s8 = sld [smem:[#allocation0]]
  $region54: #{tpu_custom_call.1} parent=0
    _
  %s10 = ssub.s32 1, %s8
  %s11 = scalar_select 0, %s10, %s8
  $region1: #{tpu_custom_call.1} parent=0
    #allocation2 [shape = 'u8[4096]{0}', space=vmem, size = 0x1000, scoped, tag = 'input window, operand 0, single buffered']
    #allocation3 [shape = 's32[1]{0}', space=sflag, size = 0x4, scoped, tag = 'scoped memory for tpu_custom_call.1']
    #allocation4 [shape = 's32[1]{0}', space=sflag, size = 0x4, scoped, tag = 'scoped memory for tpu_custom_call.1']
    #allocation5 [shape = 'u8[32768]{0}', space=vmem, size = 0x8000, scoped, tag = 'input window, operand 1, single buffered']
    #allocation6 [shape = 's32[1]{0}', space=sflag, size = 0x4, scoped, tag = 'scoped memory for tpu_custom_call.1']
    #allocation7 [shape = 'u8[32768]{0}', space=vmem, size = 0x8000, scoped, tag = 'input window, operand 3, single buffered']
    #allocation8 [shape = 'u8[32768]{0}', space=vmem, size = 0x8000, scoped, tag = 'input window, operand 5, single buffered']
    #allocation9 [shape = 's32[1]{0}', space=sflag, size = 0x4, scoped, tag = 'scoped memory for tpu_custom_call.1']
    #allocation10 [shape = 'u8[8192]{0}', space=vmem, size = 0x2000, scoped, tag = 'output window, operand 0, single buffered']
    %12 = vsyncpa [#allocation3], 0
    %13 = vsyncpa [#allocation6], 0
    %14 = vsyncpa [#allocation9], 0
    %15 = vsyncpa [#allocation4], 0
    // Predicated region
    $region2: #{tpu_custom_call.1} parent=1 // pred_check
      _
    $region3: #{tpu_custom_call.1} parent=1 // pred_check_branch
      %17 = sbr.rel (0) target = $region5
    $region4: #{tpu_custom_call.1} parent=1 // pred_region
      %s19 = ssub.s32 128, 128
      %20 = vsyncadd [#allocation3], %s19
      %s21 = sshll.u32 [#allocation2], 4
      %s22 = int_to_ptr.vmem [resolvable:$true] %s21
      %27 = dma.hbm_to_vmem [thread:$0]  %s0, 128, %s22, [#allocation3], 64, 64, 4
    $region5: #{tpu_custom_call.1} parent=1 // pred_fallthru
      _
    // Predicated region
    $region6: #{tpu_custom_call.1} parent=1 // pred_check
      _
    $region7: #{tpu_custom_call.1} parent=1 // pred_check_branch
      %29 = sbr.rel (0) target = $region9
    $region8: #{tpu_custom_call.1} parent=1 // pred_region
      %s31 = ssub.s32 1024, 1024
      %32 = vsyncadd [#allocation6], %s31
      %s33 = sshll.u32 [#allocation5], 4
      %s34 = int_to_ptr.vmem [resolvable:$true] %s33
      %39 = dma.hbm_to_vmem [thread:$0]  %s1, 1024, %s34, [#allocation6], 64, 64, 4
    $region9: #{tpu_custom_call.1} parent=1 // pred_fallthru
      _
    // Predicated region
    $region10: #{tpu_custom_call.1} parent=1 // pred_check
      _
    $region11: #{tpu_custom_call.1} parent=1 // pred_check_branch
      %41 = sbr.rel (0) target = $region13
    $region12: #{tpu_custom_call.1} parent=1 // pred_region
      _
    $region13: #{tpu_custom_call.1} parent=1 // pred_fallthru
      _
    // Predicated region
    $region14: #{tpu_custom_call.1} parent=1 // pred_check
      _
    $region15: #{tpu_custom_call.1} parent=1 // pred_check_branch
      %43 = sbr.rel (0) target = $region17
    $region16: #{tpu_custom_call.1} parent=1 // pred_region
      %s45 = ssub.s32 1024, 1024
      %46 = vsyncadd [#allocation6], %s45
      %s47 = sshll.u32 [#allocation7], 4
      %s48 = int_to_ptr.vmem [resolvable:$true] %s47
      %53 = dma.hbm_to_vmem [thread:$0]  %s3, 1024, %s48, [#allocation6], 64, 64, 4
    $region17: #{tpu_custom_call.1} parent=1 // pred_fallthru
      _
    // Predicated region
    $region18: #{tpu_custom_call.1} parent=1 // pred_check
      _
    $region19: #{tpu_custom_call.1} parent=1 // pred_check_branch
      %55 = sbr.rel (0) target = $region21
    $region20: #{tpu_custom_call.1} parent=1 // pred_region
      _
    $region21: #{tpu_custom_call.1} parent=1 // pred_fallthru
      _
    // Predicated region
    $region22: #{tpu_custom_call.1} parent=1 // pred_check
      _
    $region23: #{tpu_custom_call.1} parent=1 // pred_check_branch
      %57 = sbr.rel (0) target = $region25
    $region24: #{tpu_custom_call.1} parent=1 // pred_region
      %s59 = ssub.s32 1024, 1024
      %60 = vsyncadd [#allocation9], %s59
      %s61 = sshll.u32 [#allocation8], 4
      %s62 = int_to_ptr.vmem [resolvable:$true] %s61
      %67 = dma.hbm_to_vmem [thread:$0]  %s5, 1024, %s62, [#allocation9], 64, 64, 4
    $region25: #{tpu_custom_call.1} parent=1 // pred_fallthru
      _
    // Predicated region
    $region26: #{tpu_custom_call.1} parent=1 // pred_check
      _
    $region27: #{tpu_custom_call.1} parent=1 // pred_check_branch
      %69 = sbr.rel (0) target = $region29
    $region28: #{tpu_custom_call.1} parent=1 // pred_region
      _
    $region29: #{tpu_custom_call.1} parent=1 // pred_fallthru
      _
    // Predicated region
    $region30: #{tpu_custom_call.1} parent=1 // pred_check
      _
    $region31: #{tpu_custom_call.1} parent=1 // pred_check_branch
      %71 = sbr.rel (0) target = $region33
    $region32: #{tpu_custom_call.1} parent=1 // pred_region
      %72 = dma.done [#allocation3], 128
    $region33: #{tpu_custom_call.1} parent=1 // pred_fallthru
      _
    // Predicated region
    $region34: #{tpu_custom_call.1} parent=1 // pred_check
      _
    $region35: #{tpu_custom_call.1} parent=1 // pred_check_branch
      %74 = sbr.rel (0) target = $region37
    $region36: #{tpu_custom_call.1} parent=1 // pred_region
      %75 = dma.done [#allocation6], 1024
    $region37: #{tpu_custom_call.1} parent=1 // pred_fallthru
      _
    // Predicated region
    $region38: #{tpu_custom_call.1} parent=1 // pred_check
      _
    $region39: #{tpu_custom_call.1} parent=1 // pred_check_branch
      %77 = sbr.rel (0) target = $region41
    $region40: #{tpu_custom_call.1} parent=1 // pred_region
      %78 = dma.done [#allocation6], 1024
    $region41: #{tpu_custom_call.1} parent=1 // pred_fallthru
      _
    // Predicated region
    $region42: #{tpu_custom_call.1} parent=1 // pred_check
      _
    $region43: #{tpu_custom_call.1} parent=1 // pred_check_branch
      %80 = sbr.rel (0) target = $region45
    $region44: #{tpu_custom_call.1} parent=1 // pred_region
      %81 = dma.done [#allocation9], 1024
    $region45: #{tpu_custom_call.1} parent=1 // pred_fallthru
      _
    %v83 = vld [vmem:[#allocation2] sm:$0xf]
    %v84 = vld [vmem:[#allocation2 + $0x4] sm:$0xf]
    %v85 = vld [vmem:[#allocation5] sm:$0xf]
    %v86 = vld [vmem:[#allocation5 + $0x4] sm:$0xf]
    %v87 = vld [vmem:[#allocation5 + $0x8] sm:$0xf]
    %v88 = vld [vmem:[#allocation5 + $0xc] sm:$0xf]
    %v89 = vld [vmem:[#allocation5 + $0x10] sm:$0xf]
    %v90 = vld [vmem:[#allocation5 + $0x14] sm:$0xf]
    %v91 = vld [vmem:[#allocation5 + $0x18] sm:$0xf]
    %v92 = vld [vmem:[#allocation5 + $0x1c] sm:$0xf]
    %v93 = vld [vmem:[#allocation5 + $0x20] sm:$0xf]
    %v94 = vld [vmem:[#allocation5 + $0x24] sm:$0xf]
    %v95 = vld [vmem:[#allocation5 + $0x28] sm:$0xf]
    %v96 = vld [vmem:[#allocation5 + $0x2c] sm:$0xf]
    %v97 = vld [vmem:[#allocation5 + $0x30] sm:$0xf]
    %v98 = vld [vmem:[#allocation5 + $0x34] sm:$0xf]
    %v99 = vld [vmem:[#allocation5 + $0x38] sm:$0xf]
    %v100 = vld [vmem:[#allocation5 + $0x3c] sm:$0xf]
    %v101 = vld [vmem:[%s2] sm:$0x1]
    %v103 = vlaneseq
    %v104 = vshrl.u32 %v103, 7
    %v105 = vsub.s32 0, %v104
    %v106 = vrot.slane %v101, %v105
    %v110 = vunpack.c.l.b16 %v83
    %v111 = vunpack.c.l.b16 %v84
    %v112 = vpack.c.b16 %v111, %v110
    %v130 = vunpack.c.l.b16 %v85
    %v131 = vunpack.c.l.b16 %v86
    %v132 = vunpack.c.l.b16 %v87
    %v133 = vunpack.c.l.b16 %v88
    %v134 = vunpack.c.l.b16 %v89
    %v135 = vunpack.c.l.b16 %v90
    %v136 = vunpack.c.l.b16 %v91
    %v137 = vunpack.c.l.b16 %v92
    %v138 = vunpack.c.l.b16 %v93
    %v139 = vunpack.c.l.b16 %v94
    %v140 = vunpack.c.l.b16 %v95
    %v141 = vunpack.c.l.b16 %v96
    %v142 = vunpack.c.l.b16 %v97
    %v143 = vunpack.c.l.b16 %v98
    %v144 = vunpack.c.l.b16 %v99
    %v145 = vunpack.c.l.b16 %v100
    %v146 = vpack.c.b16 %v131, %v130
    %v147 = vpack.c.b16 %v133, %v132
    %v148 = vpack.c.b16 %v135, %v134
    %v149 = vpack.c.b16 %v137, %v136
    %v150 = vpack.c.b16 %v139, %v138
    %v151 = vpack.c.b16 %v141, %v140
    %v152 = vpack.c.b16 %v143, %v142
    %v153 = vpack.c.b16 %v145, %v144
    %162 = vmatprep.subr.bf16.mxu0 0
    %163 = vmatpush1.bf16.msra.mxu0 %v153
    %164 = vmatprep.subr.bf16.mxu0 0
    %165 = vmatpush1.bf16.msra.mxu0 %v152
    %166 = vmatprep.subr.bf16.mxu0 0
    %167 = vmatpush1.bf16.msra.mxu0 %v151
    %168 = vmatprep.subr.bf16.mxu0 0
    %169 = vmatpush1.bf16.msra.mxu0 %v150
    %170 = vmatprep.subr.bf16.mxu0 0
    %171 = vmatpush1.bf16.msra.mxu0 %v149
    %172 = vmatprep.subr.bf16.mxu0 0
    %173 = vmatpush1.bf16.msra.mxu0 %v148
    %174 = vmatprep.subr.bf16.mxu0 0
    %175 = vmatpush1.bf16.msra.mxu0 %v147
    %176 = vmatprep.subr.bf16.mxu0 0
    %177 = vmatpush1.bf16.msra.mxu0 %v146
    %178 = vmatprep.subr.bf16.mxu0 0
    %179 = vmatpush2.bf16.msra.mxu0 0
    %180 = vmatprep.subr.bf16.mxu0 0
    %181 = vmatpush2.bf16.msra.mxu0 0
    %182 = vmatprep.subr.bf16.mxu0 0
    %183 = vmatpush2.bf16.msra.mxu0 0
    %184 = vmatprep.subr.bf16.mxu0 0
    %185 = vmatpush2.bf16.msra.mxu0 0
    %186 = vmatprep.subr.bf16.mxu0 0
    %187 = vmatpush2.bf16.msra.mxu0 0
    %188 = vmatprep.subr.bf16.mxu0 0
    %189 = vmatpush2.bf16.msra.mxu0 0
    %190 = vmatprep.subr.bf16.mxu0 0
    %191 = vmatpush2.bf16.msra.mxu0 0
    %192 = vmatprep.subr.bf16.mxu0 0
    %193 = vmatpush2.bf16.msra.mxu0 0
    %194 = vmatprep.mubr.bf16.mxu0 0
    %195 = vmatmul.mubr.bf16.gmra.mxu0 %v112
    %v196 = vpop.f32.mrf.mxu0
    %v197 = vadd.f32 %v106, %v196
    %v198 = vpop.f32.mrf.mxu0
    %v199 = vpop.f32.mrf.mxu0
    %v200 = vadd.f32 %v106, %v199
    %v201 = vpop.f32.mrf.mxu0
    %202 = vdwg.mxu0
    %v203 = vpack.c.bf16 %v200, %v197
    %v204 = vld [vmem:[#allocation7] sm:$0xf]
    %v205 = vld [vmem:[#allocation7 + $0x4] sm:$0xf]
    %v206 = vld [vmem:[#allocation7 + $0x8] sm:$0xf]
    %v207 = vld [vmem:[#allocation7 + $0xc] sm:$0xf]
    %v208 = vld [vmem:[#allocation7 + $0x10] sm:$0xf]
    %v209 = vld [vmem:[#allocation7 + $0x14] sm:$0xf]
    %v210 = vld [vmem:[#allocation7 + $0x18] sm:$0xf]
    %v211 = vld [vmem:[#allocation7 + $0x1c] sm:$0xf]
    %v212 = vld [vmem:[#allocation7 + $0x20] sm:$0xf]
    %v213 = vld [vmem:[#allocation7 + $0x24] sm:$0xf]
    %v214 = vld [vmem:[#allocation7 + $0x28] sm:$0xf]
    %v215 = vld [vmem:[#allocation7 + $0x2c] sm:$0xf]
    %v216 = vld [vmem:[#allocation7 + $0x30] sm:$0xf]
    %v217 = vld [vmem:[#allocation7 + $0x34] sm:$0xf]
    %v218 = vld [vmem:[#allocation7 + $0x38] sm:$0xf]
    %v219 = vld [vmem:[#allocation7 + $0x3c] sm:$0xf]
    %v220 = vld [vmem:[%s4] sm:$0x1]
    %v222 = vlaneseq
    %v223 = vshrl.u32 %v222, 7
    %v224 = vsub.s32 0, %v223
    %v225 = vrot.slane %v220, %v224
    %v243 = vunpack.c.l.b16 %v204
    %v244 = vunpack.c.l.b16 %v205
    %v245 = vunpack.c.l.b16 %v206
    %v246 = vunpack.c.l.b16 %v207
    %v247 = vunpack.c.l.b16 %v208
    %v248 = vunpack.c.l.b16 %v209
    %v249 = vunpack.c.l.b16 %v210
    %v250 = vunpack.c.l.b16 %v211
    %v251 = vunpack.c.l.b16 %v212
    %v252 = vunpack.c.l.b16 %v213
    %v253 = vunpack.c.l.b16 %v214
    %v254 = vunpack.c.l.b16 %v215
    %v255 = vunpack.c.l.b16 %v216
    %v256 = vunpack.c.l.b16 %v217
    %v257 = vunpack.c.l.b16 %v218
    %v258 = vunpack.c.l.b16 %v219
    %v259 = vpack.c.b16 %v244, %v243
    %v260 = vpack.c.b16 %v246, %v245
    %v261 = vpack.c.b16 %v248, %v247
    %v262 = vpack.c.b16 %v250, %v249
    %v263 = vpack.c.b16 %v252, %v251
    %v264 = vpack.c.b16 %v254, %v253
    %v265 = vpack.c.b16 %v256, %v255
    %v266 = vpack.c.b16 %v258, %v257
    %275 = vmatprep.subr.bf16.mxu0 0
    %276 = vmatpush1.bf16.msra.mxu0 %v266
    %277 = vmatprep.subr.bf16.mxu0 0
    %278 = vmatpush1.bf16.msra.mxu0 %v265
    %279 = vmatprep.subr.bf16.mxu0 0
    %280 = vmatpush1.bf16.msra.mxu0 %v264
    %281 = vmatprep.subr.bf16.mxu0 0
    %282 = vmatpush1.bf16.msra.mxu0 %v263
    %283 = vmatprep.subr.bf16.mxu0 0
    %284 = vmatpush1.bf16.msra.mxu0 %v262
    %285 = vmatprep.subr.bf16.mxu0 0
    %286 = vmatpush1.bf16.msra.mxu0 %v261
    %287 = vmatprep.subr.bf16.mxu0 0
    %288 = vmatpush1.bf16.msra.mxu0 %v260
    %289 = vmatprep.subr.bf16.mxu0 0
    %290 = vmatpush1.bf16.msra.mxu0 %v259
    %291 = vmatprep.subr.bf16.mxu0 0
    %292 = vmatpush2.bf16.msra.mxu0 0
    %293 = vmatprep.subr.bf16.mxu0 0
    %294 = vmatpush2.bf16.msra.mxu0 0
    %295 = vmatprep.subr.bf16.mxu0 0
    %296 = vmatpush2.bf16.msra.mxu0 0
    %297 = vmatprep.subr.bf16.mxu0 0
    %298 = vmatpush2.bf16.msra.mxu0 0
    %299 = vmatprep.subr.bf16.mxu0 0
    %300 = vmatpush2.bf16.msra.mxu0 0
    %301 = vmatprep.subr.bf16.mxu0 0
    %302 = vmatpush2.bf16.msra.mxu0 0
    %303 = vmatprep.subr.bf16.mxu0 0
    %304 = vmatpush2.bf16.msra.mxu0 0
    %305 = vmatprep.subr.bf16.mxu0 0
    %306 = vmatpush2.bf16.msra.mxu0 0
    %307 = vmatprep.mubr.bf16.mxu0 0
    %308 = vmatmul.mubr.bf16.gmra.mxu0 %v203
    %v309 = vpop.f32.mrf.mxu0
    %v310 = vadd.f32 %v225, %v309
    %v311 = vpop.f32.mrf.mxu0
    %v312 = vpop.f32.mrf.mxu0
    %v313 = vadd.f32 %v225, %v312
    %v314 = vpop.f32.mrf.mxu0
    %315 = vdwg.mxu0
    %v316 = vmul.f32 %v310, 0.5
    %v317 = vmul.f32 %v313, 0.5
    %v318 = vmul.f32 %v310, 0.70710677
    %v319 = vmul.f32 %v313, 0.70710677
    %v320 = verf.f32.pop %v318
    %v321 = verf.f32.pop %v319
    %v322 = vadd.f32 %v320, 1.0
    %v323 = vadd.f32 %v321, 1.0
    %v324 = vmul.f32 %v316, %v322
    %v325 = vmul.f32 %v317, %v323
    %v326 = vpack.c.bf16 %v325, %v324
    %v327 = vld [vmem:[#allocation8] sm:$0xf]
    %v328 = vld [vmem:[#allocation8 + $0x4] sm:$0xf]
    %v329 = vld [vmem:[#allocation8 + $0x8] sm:$0xf]
    %v330 = vld [vmem:[#allocation8 + $0xc] sm:$0xf]
    %v331 = vld [vmem:[#allocation8 + $0x10] sm:$0xf]
    %v332 = vld [vmem:[#allocation8 + $0x14] sm:$0xf]
    %v333 = vld [vmem:[#allocation8 + $0x18] sm:$0xf]
    %v334 = vld [vmem:[#allocation8 + $0x1c] sm:$0xf]
    %v335 = vld [vmem:[#allocation8 + $0x20] sm:$0xf]
    %v336 = vld [vmem:[#allocation8 + $0x24] sm:$0xf]
    %v337 = vld [vmem:[#allocation8 + $0x28] sm:$0xf]
    %v338 = vld [vmem:[#allocation8 + $0x2c] sm:$0xf]
    %v339 = vld [vmem:[#allocation8 + $0x30] sm:$0xf]
    %v340 = vld [vmem:[#allocation8 + $0x34] sm:$0xf]
    %v341 = vld [vmem:[#allocation8 + $0x38] sm:$0xf]
    %v342 = vld [vmem:[#allocation8 + $0x3c] sm:$0xf]
    %v343 = vld [vmem:[%s6] sm:$0x1]
    %v345 = vlaneseq
    %v346 = vshrl.u32 %v345, 7
    %v347 = vsub.s32 0, %v346
    %v348 = vrot.slane %v343, %v347
    %v366 = vunpack.c.l.b16 %v327
    %v367 = vunpack.c.l.b16 %v328
    %v368 = vunpack.c.l.b16 %v329
    %v369 = vunpack.c.l.b16 %v330
    %v370 = vunpack.c.l.b16 %v331
    %v371 = vunpack.c.l.b16 %v332
    %v372 = vunpack.c.l.b16 %v333
    %v373 = vunpack.c.l.b16 %v334
    %v374 = vunpack.c.l.b16 %v335
    %v375 = vunpack.c.l.b16 %v336
    %v376 = vunpack.c.l.b16 %v337
    %v377 = vunpack.c.l.b16 %v338
    %v378 = vunpack.c.l.b16 %v339
    %v379 = vunpack.c.l.b16 %v340
    %v380 = vunpack.c.l.b16 %v341
    %v381 = vunpack.c.l.b16 %v342
    %v382 = vpack.c.b16 %v367, %v366
    %v383 = vpack.c.b16 %v369, %v368
    %v384 = vpack.c.b16 %v371, %v370
    %v385 = vpack.c.b16 %v373, %v372
    %v386 = vpack.c.b16 %v375, %v374
    %v387 = vpack.c.b16 %v377, %v376
    %v388 = vpack.c.b16 %v379, %v378
    %v389 = vpack.c.b16 %v381, %v380
    %398 = vmatprep.subr.bf16.mxu0 0
    %399 = vmatpush1.bf16.msra.mxu0 %v389
    %400 = vmatprep.subr.bf16.mxu0 0
    %401 = vmatpush1.bf16.msra.mxu0 %v388
    %402 = vmatprep.subr.bf16.mxu0 0
    %403 = vmatpush1.bf16.msra.mxu0 %v387
    %404 = vmatprep.subr.bf16.mxu0 0
    %405 = vmatpush1.bf16.msra.mxu0 %v386
    %406 = vmatprep.subr.bf16.mxu0 0
    %407 = vmatpush1.bf16.msra.mxu0 %v385
    %408 = vmatprep.subr.bf16.mxu0 0
    %409 = vmatpush1.bf16.msra.mxu0 %v384
    %410 = vmatprep.subr.bf16.mxu0 0
    %411 = vmatpush1.bf16.msra.mxu0 %v383
    %412 = vmatprep.subr.bf16.mxu0 0
    %413 = vmatpush1.bf16.msra.mxu0 %v382
    %414 = vmatprep.subr.bf16.mxu0 0
    %415 = vmatpush2.bf16.msra.mxu0 0
    %416 = vmatprep.subr.bf16.mxu0 0
    %417 = vmatpush2.bf16.msra.mxu0 0
    %418 = vmatprep.subr.bf16.mxu0 0
    %419 = vmatpush2.bf16.msra.mxu0 0
    %420 = vmatprep.subr.bf16.mxu0 0
    %421 = vmatpush2.bf16.msra.mxu0 0
    %422 = vmatprep.subr.bf16.mxu0 0
    %423 = vmatpush2.bf16.msra.mxu0 0
    %424 = vmatprep.subr.bf16.mxu0 0
    %425 = vmatpush2.bf16.msra.mxu0 0
    %426 = vmatprep.subr.bf16.mxu0 0
    %427 = vmatpush2.bf16.msra.mxu0 0
    %428 = vmatprep.subr.bf16.mxu0 0
    %429 = vmatpush2.bf16.msra.mxu0 0
    %430 = vmatprep.mubr.bf16.mxu0 0
    %431 = vmatmul.mubr.bf16.gmra.mxu0 %v326
    %v432 = vpop.f32.mrf.mxu0
    %v433 = vadd.f32 %v348, %v432
    %v434 = vpop.f32.mrf.mxu0
    %v435 = vpop.f32.mrf.mxu0
    %v436 = vadd.f32 %v348, %v435
    %v437 = vpop.f32.mrf.mxu0
    %438 = vdwg.mxu0
    %439 = vst [vmem:[#allocation10] sm:$0xff] %v433
    %440 = vst [vmem:[#allocation10 + $0x8] sm:$0xff] %v436
    // Predicated region
    $region46: #{tpu_custom_call.1} parent=1 // pred_check
      _
    $region47: #{tpu_custom_call.1} parent=1 // pred_check_branch
      %442 = sbr.rel (0) target = $region49
    $region48: #{tpu_custom_call.1} parent=1 // pred_region
      %s444 = ssub.s32 256, 256
      %445 = vsyncadd [#allocation4], %s444
      %s446 = sshll.u32 [#allocation10], 4
      %s447 = int_to_ptr.vmem [resolvable:$true] %s446
      %452 = dma.vmem_to_hbm [thread:$0]  %s447, 256, %s7, [#allocation4], 128, 128, 8
    $region49: #{tpu_custom_call.1} parent=1 // pred_fallthru
      _
    // Predicated region
    $region50: #{tpu_custom_call.1} parent=1 // pred_check
      _
    $region51: #{tpu_custom_call.1} parent=1 // pred_check_branch
      %454 = sbr.rel (0) target = $region53
    $region52: #{tpu_custom_call.1} parent=1 // pred_region
      %455 = dma.done [#allocation4], 256
    $region53: #{tpu_custom_call.1} parent=1 // pred_fallthru
      _
    %456 = vsyncpa [#allocation3], 1
    %457 = vsyncpa [#allocation6], 1
    %458 = vsyncpa [#allocation9], 1
    %459 = vsyncpa [#allocation4], 1

// kernel: tpu_custom_call.1
$region0: #{tpu_custom_call.1}
  #allocation0 [shape = 'u32[]', space=smem, size = 0x4, offset = 0x4, fixed_abs, tag = 'smem constant byte address 0x4 - core index']
  #allocation1 [shape = 'u32[144,128]{1,0:T(1,128)}', space=vmem, size = 0x12000, scoped, tag = 'internal scratch']
  %s0 = inlined_call_operand.hbm [shape: bf16[16,128], index: 0, kind: input, shape index: {}]
  %s1 = inlined_call_operand.hbm [shape: bf16[128,128], index: 1, kind: input, shape index: {}]
  %s2 = inlined_call_operand.vmem [shape: f32[1,128], index: 2, kind: input, shape index: {}]
  %s3 = inlined_call_operand.hbm [shape: bf16[128,128], index: 3, kind: input, shape index: {}]
  %s4 = inlined_call_operand.vmem [shape: f32[1,128], index: 4, kind: input, shape index: {}]
  %s5 = inlined_call_operand.hbm [shape: bf16[128,128], index: 5, kind: input, shape index: {}]
  %s6 = inlined_call_operand.vmem [shape: f32[1,128], index: 6, kind: input, shape index: {}]
  %s7 = inlined_call_operand.hbm [shape: f32[16,128], index: 7, kind: output, shape index: {}]
  %s8 = sld [smem:[#allocation0]]
  $region54: #{tpu_custom_call.1} parent=0
    _
  %s10 = ssub.s32 1, %s8
  %s11 = scalar_select 0, %s10, %s8
  $region1: #{tpu_custom_call.1} parent=0
    #allocation2 [shape = 'u8[4096]{0}', space=vmem, size = 0x1000, scoped, tag = 'input window, operand 0, single buffered']
    #allocation3 [shape = 's32[1]{0}', space=sflag, size = 0x4, scoped, tag = 'scoped memory for tpu_custom_call.1']
    #allocation4 [shape = 's32[1]{0}', space=sflag, size = 0x4, scoped, tag = 'scoped memory for tpu_custom_call.1']
    #allocation5 [shape = 'u8[32768]{0}', space=vmem, size = 0x8000, scoped, tag = 'input window, operand 1, single buffered']
    #allocation6 [shape = 's32[1]{0}', space=sflag, size = 0x4, scoped, tag = 'scoped memory for tpu_custom_call.1']
    #allocation7 [shape = 'u8[32768]{0}', space=vmem, size = 0x8000, scoped, tag = 'input window, operand 3, single buffered']
    #allocation8 [shape = 'u8[32768]{0}', space=vmem, size = 0x8000, scoped, tag = 'input window, operand 5, single buffered']
    #allocation9 [shape = 's32[1]{0}', space=sflag, size = 0x4, scoped, tag = 'scoped memory for tpu_custom_call.1']
    #allocation10 [shape = 'u8[8192]{0}', space=vmem, size = 0x2000, scoped, tag = 'output window, operand 0, single buffered']
    %12 = vsyncpa [#allocation3], 0
    %13 = vsyncpa [#allocation6], 0
    %14 = vsyncpa [#allocation9], 0
    %15 = vsyncpa [#allocation4], 0
    // Predicated region
    $region2: #{tpu_custom_call.1} parent=1 // pred_check
      _
    $region3: #{tpu_custom_call.1} parent=1 // pred_check_branch
      %17 = sbr.rel (0) target = $region5
    $region4: #{tpu_custom_call.1} parent=1 // pred_region
      %s19 = ssub.s32 128, 128
      %20 = vsyncadd [#allocation3], %s19
      %s21 = sshll.u32 [#allocation2], 4
      %s22 = int_to_ptr.vmem [resolvable:$true] %s21
      %27 = dma.hbm_to_vmem [thread:$0]  %s0, 128, %s22, [#allocation3], 64, 64, 4
    $region5: #{tpu_custom_call.1} parent=1 // pred_fallthru
      _
    // Predicated region
    $region6: #{tpu_custom_call.1} parent=1 // pred_check
      _
    $region7: #{tpu_custom_call.1} parent=1 // pred_check_branch
      %29 = sbr.rel (0) target = $region9
    $region8: #{tpu_custom_call.1} parent=1 // pred_region
      %s31 = ssub.s32 1024, 1024
      %32 = vsyncadd [#allocation6], %s31
      %s33 = sshll.u32 [#allocation5], 4
      %s34 = int_to_ptr.vmem [resolvable:$true] %s33
      %39 = dma.hbm_to_vmem [thread:$0]  %s1, 1024, %s34, [#allocation6], 64, 64, 4
    $region9: #{tpu_custom_call.1} parent=1 // pred_fallthru
      _
    // Predicated region
    $region10: #{tpu_custom_call.1} parent=1 // pred_check
      _
    $region11: #{tpu_custom_call.1} parent=1 // pred_check_branch
      %41 = sbr.rel (0) target = $region13
    $region12: #{tpu_custom_call.1} parent=1 // pred_region
      _
    $region13: #{tpu_custom_call.1} parent=1 // pred_fallthru
      _
    // Predicated region
    $region14: #{tpu_custom_call.1} parent=1 // pred_check
      _
    $region15: #{tpu_custom_call.1} parent=1 // pred_check_branch
      %43 = sbr.rel (0) target = $region17
    $region16: #{tpu_custom_call.1} parent=1 // pred_region
      %s45 = ssub.s32 1024, 1024
      %46 = vsyncadd [#allocation6], %s45
      %s47 = sshll.u32 [#allocation7], 4
      %s48 = int_to_ptr.vmem [resolvable:$true] %s47
      %53 = dma.hbm_to_vmem [thread:$0]  %s3, 1024, %s48, [#allocation6], 64, 64, 4
    $region17: #{tpu_custom_call.1} parent=1 // pred_fallthru
      _
    // Predicated region
    $region18: #{tpu_custom_call.1} parent=1 // pred_check
      _
    $region19: #{tpu_custom_call.1} parent=1 // pred_check_branch
      %55 = sbr.rel (0) target = $region21
    $region20: #{tpu_custom_call.1} parent=1 // pred_region
      _
    $region21: #{tpu_custom_call.1} parent=1 // pred_fallthru
      _
    // Predicated region
    $region22: #{tpu_custom_call.1} parent=1 // pred_check
      _
    $region23: #{tpu_custom_call.1} parent=1 // pred_check_branch
      %57 = sbr.rel (0) target = $region25
    $region24: #{tpu_custom_call.1} parent=1 // pred_region
      %s59 = ssub.s32 1024, 1024
      %60 = vsyncadd [#allocation9], %s59
      %s61 = sshll.u32 [#allocation8], 4
      %s62 = int_to_ptr.vmem [resolvable:$true] %s61
      %67 = dma.hbm_to_vmem [thread:$0]  %s5, 1024, %s62, [#allocation9], 64, 64, 4
    $region25: #{tpu_custom_call.1} parent=1 // pred_fallthru
      _
    // Predicated region
    $region26: #{tpu_custom_call.1} parent=1 // pred_check
      _
    $region27: #{tpu_custom_call.1} parent=1 // pred_check_branch
      %69 = sbr.rel (0) target = $region29
    $region28: #{tpu_custom_call.1} parent=1 // pred_region
      _
    $region29: #{tpu_custom_call.1} parent=1 // pred_fallthru
      _
    // Predicated region
    $region30: #{tpu_custom_call.1} parent=1 // pred_check
      _
    $region31: #{tpu_custom_call.1} parent=1 // pred_check_branch
      %71 = sbr.rel (0) target = $region33
    $region32: #{tpu_custom_call.1} parent=1 // pred_region
      %72 = dma.done [#allocation3], 128
    $region33: #{tpu_custom_call.1} parent=1 // pred_fallthru
      _
    // Predicated region
    $region34: #{tpu_custom_call.1} parent=1 // pred_check
      _
    $region35: #{tpu_custom_call.1} parent=1 // pred_check_branch
      %74 = sbr.rel (0) target = $region37
    $region36: #{tpu_custom_call.1} parent=1 // pred_region
      %75 = dma.done [#allocation6], 1024
    $region37: #{tpu_custom_call.1} parent=1 // pred_fallthru
      _
    // Predicated region
    $region38: #{tpu_custom_call.1} parent=1 // pred_check
      _
    $region39: #{tpu_custom_call.1} parent=1 // pred_check_branch
      %77 = sbr.rel (0) target = $region41
    $region40: #{tpu_custom_call.1} parent=1 // pred_region
      %78 = dma.done [#allocation6], 1024
    $region41: #{tpu_custom_call.1} parent=1 // pred_fallthru
      _
    // Predicated region
    $region42: #{tpu_custom_call.1} parent=1 // pred_check
      _
    $region43: #{tpu_custom_call.1} parent=1 // pred_check_branch
      %80 = sbr.rel (0) target = $region45
    $region44: #{tpu_custom_call.1} parent=1 // pred_region
      %81 = dma.done [#allocation9], 1024
    $region45: #{tpu_custom_call.1} parent=1 // pred_fallthru
      _
    %v83 = vld [vmem:[#allocation2] sm:$0xf]
    %v84 = vld [vmem:[#allocation2 + $0x4] sm:$0xf]
    %v85 = vld [vmem:[#allocation5] sm:$0xf]
    %v86 = vld [vmem:[#allocation5 + $0x4] sm:$0xf]
    %v87 = vld [vmem:[#allocation5 + $0x8] sm:$0xf]
    %v88 = vld [vmem:[#allocation5 + $0xc] sm:$0xf]
    %v89 = vld [vmem:[#allocation5 + $0x10] sm:$0xf]
    %v90 = vld [vmem:[#allocation5 + $0x14] sm:$0xf]
    %v91 = vld [vmem:[#allocation5 + $0x18] sm:$0xf]
    %v92 = vld [vmem:[#allocation5 + $0x1c] sm:$0xf]
    %v93 = vld [vmem:[#allocation5 + $0x20] sm:$0xf]
    %v94 = vld [vmem:[#allocation5 + $0x24] sm:$0xf]
    %v95 = vld [vmem:[#allocation5 + $0x28] sm:$0xf]
    %v96 = vld [vmem:[#allocation5 + $0x2c] sm:$0xf]
    %v97 = vld [vmem:[#allocation5 + $0x30] sm:$0xf]
    %v98 = vld [vmem:[#allocation5 + $0x34] sm:$0xf]
    %v99 = vld [vmem:[#allocation5 + $0x38] sm:$0xf]
    %v100 = vld [vmem:[#allocation5 + $0x3c] sm:$0xf]
    %v101 = vld [vmem:[%s2] sm:$0x1]
    %v103 = vlaneseq
    %v104 = vshrl.u32 %v103, 7
    %v105 = vsub.s32 0, %v104
    %v106 = vrot.slane %v101, %v105
    %v110 = vunpack.c.l.b16 %v83
    %v111 = vunpack.c.l.b16 %v84
    %v112 = vpack.c.b16 %v111, %v110
    %v130 = vunpack.c.l.b16 %v85
    %v131 = vunpack.c.l.b16 %v86
    %v132 = vunpack.c.l.b16 %v87
    %v133 = vunpack.c.l.b16 %v88
    %v134 = vunpack.c.l.b16 %v89
    %v135 = vunpack.c.l.b16 %v90
    %v136 = vunpack.c.l.b16 %v91
    %v137 = vunpack.c.l.b16 %v92
    %v138 = vunpack.c.l.b16 %v93
    %v139 = vunpack.c.l.b16 %v94
    %v140 = vunpack.c.l.b16 %v95
    %v141 = vunpack.c.l.b16 %v96
    %v142 = vunpack.c.l.b16 %v97
    %v143 = vunpack.c.l.b16 %v98
    %v144 = vunpack.c.l.b16 %v99
    %v145 = vunpack.c.l.b16 %v100
    %v146 = vpack.c.b16 %v131, %v130
    %v147 = vpack.c.b16 %v133, %v132
    %v148 = vpack.c.b16 %v135, %v134
    %v149 = vpack.c.b16 %v137, %v136
    %v150 = vpack.c.b16 %v139, %v138
    %v151 = vpack.c.b16 %v141, %v140
    %v152 = vpack.c.b16 %v143, %v142
    %v153 = vpack.c.b16 %v145, %v144
    %162 = vmatprep.subr.bf16.mxu0 0
    %163 = vmatpush1.bf16.msra.mxu0 %v153
    %164 = vmatprep.subr.bf16.mxu0 0
    %165 = vmatpush1.bf16.msra.mxu0 %v152
    %166 = vmatprep.subr.bf16.mxu0 0
    %167 = vmatpush1.bf16.msra.mxu0 %v151
    %168 = vmatprep.subr.bf16.mxu0 0
    %169 = vmatpush1.bf16.msra.mxu0 %v150
    %170 = vmatprep.subr.bf16.mxu0 0
    %171 = vmatpush1.bf16.msra.mxu0 %v149
    %172 = vmatprep.subr.bf16.mxu0 0
    %173 = vmatpush1.bf16.msra.mxu0 %v148
    %174 = vmatprep.subr.bf16.mxu0 0
    %175 = vmatpush1.bf16.msra.mxu0 %v147
    %176 = vmatprep.subr.bf16.mxu0 0
    %177 = vmatpush1.bf16.msra.mxu0 %v146
    %178 = vmatprep.subr.bf16.mxu0 0
    %179 = vmatpush2.bf16.msra.mxu0 0
    %180 = vmatprep.subr.bf16.mxu0 0
    %181 = vmatpush2.bf16.msra.mxu0 0
    %182 = vmatprep.subr.bf16.mxu0 0
    %183 = vmatpush2.bf16.msra.mxu0 0
    %184 = vmatprep.subr.bf16.mxu0 0
    %185 = vmatpush2.bf16.msra.mxu0 0
    %186 = vmatprep.subr.bf16.mxu0 0
    %187 = vmatpush2.bf16.msra.mxu0 0
    %188 = vmatprep.subr.bf16.mxu0 0
    %189 = vmatpush2.bf16.msra.mxu0 0
    %190 = vmatprep.subr.bf16.mxu0 0
    %191 = vmatpush2.bf16.msra.mxu0 0
    %192 = vmatprep.subr.bf16.mxu0 0
    %193 = vmatpush2.bf16.msra.mxu0 0
    %194 = vmatprep.mubr.bf16.mxu0 0
    %195 = vmatmul.mubr.bf16.gmra.mxu0 %v112
    %v196 = vpop.f32.mrf.mxu0
    %v197 = vadd.f32 %v106, %v196
    %v198 = vpop.f32.mrf.mxu0
    %v199 = vpop.f32.mrf.mxu0
    %v200 = vadd.f32 %v106, %v199
    %v201 = vpop.f32.mrf.mxu0
    %202 = vdwg.mxu0
    %v203 = vpack.c.bf16 %v200, %v197
    %v204 = vld [vmem:[#allocation7] sm:$0xf]
    %v205 = vld [vmem:[#allocation7 + $0x4] sm:$0xf]
    %v206 = vld [vmem:[#allocation7 + $0x8] sm:$0xf]
    %v207 = vld [vmem:[#allocation7 + $0xc] sm:$0xf]
    %v208 = vld [vmem:[#allocation7 + $0x10] sm:$0xf]
    %v209 = vld [vmem:[#allocation7 + $0x14] sm:$0xf]
    %v210 = vld [vmem:[#allocation7 + $0x18] sm:$0xf]
    %v211 = vld [vmem:[#allocation7 + $0x1c] sm:$0xf]
    %v212 = vld [vmem:[#allocation7 + $0x20] sm:$0xf]
    %v213 = vld [vmem:[#allocation7 + $0x24] sm:$0xf]
    %v214 = vld [vmem:[#allocation7 + $0x28] sm:$0xf]
    %v215 = vld [vmem:[#allocation7 + $0x2c] sm:$0xf]
    %v216 = vld [vmem:[#allocation7 + $0x30] sm:$0xf]
    %v217 = vld [vmem:[#allocation7 + $0x34] sm:$0xf]
    %v218 = vld [vmem:[#allocation7 + $0x38] sm:$0xf]
    %v219 = vld [vmem:[#allocation7 + $0x3c] sm:$0xf]
    %v220 = vld [vmem:[%s4] sm:$0x1]
    %v222 = vlaneseq
    %v223 = vshrl.u32 %v222, 7
    %v224 = vsub.s32 0, %v223
    %v225 = vrot.slane %v220, %v224
    %v243 = vunpack.c.l.b16 %v204
    %v244 = vunpack.c.l.b16 %v205
    %v245 = vunpack.c.l.b16 %v206
    %v246 = vunpack.c.l.b16 %v207
    %v247 = vunpack.c.l.b16 %v208
    %v248 = vunpack.c.l.b16 %v209
    %v249 = vunpack.c.l.b16 %v210
    %v250 = vunpack.c.l.b16 %v211
    %v251 = vunpack.c.l.b16 %v212
    %v252 = vunpack.c.l.b16 %v213
    %v253 = vunpack.c.l.b16 %v214
    %v254 = vunpack.c.l.b16 %v215
    %v255 = vunpack.c.l.b16 %v216
    %v256 = vunpack.c.l.b16 %v217
    %v257 = vunpack.c.l.b16 %v218
    %v258 = vunpack.c.l.b16 %v219
    %v259 = vpack.c.b16 %v244, %v243
    %v260 = vpack.c.b16 %v246, %v245
    %v261 = vpack.c.b16 %v248, %v247
    %v262 = vpack.c.b16 %v250, %v249
    %v263 = vpack.c.b16 %v252, %v251
    %v264 = vpack.c.b16 %v254, %v253
    %v265 = vpack.c.b16 %v256, %v255
    %v266 = vpack.c.b16 %v258, %v257
    %275 = vmatprep.subr.bf16.mxu0 0
    %276 = vmatpush1.bf16.msra.mxu0 %v266
    %277 = vmatprep.subr.bf16.mxu0 0
    %278 = vmatpush1.bf16.msra.mxu0 %v265
    %279 = vmatprep.subr.bf16.mxu0 0
    %280 = vmatpush1.bf16.msra.mxu0 %v264
    %281 = vmatprep.subr.bf16.mxu0 0
    %282 = vmatpush1.bf16.msra.mxu0 %v263
    %283 = vmatprep.subr.bf16.mxu0 0
    %284 = vmatpush1.bf16.msra.mxu0 %v262
    %285 = vmatprep.subr.bf16.mxu0 0
    %286 = vmatpush1.bf16.msra.mxu0 %v261
    %287 = vmatprep.subr.bf16.mxu0 0
    %288 = vmatpush1.bf16.msra.mxu0 %v260
    %289 = vmatprep.subr.bf16.mxu0 0
    %290 = vmatpush1.bf16.msra.mxu0 %v259
    %291 = vmatprep.subr.bf16.mxu0 0
    %292 = vmatpush2.bf16.msra.mxu0 0
    %293 = vmatprep.subr.bf16.mxu0 0
    %294 = vmatpush2.bf16.msra.mxu0 0
    %295 = vmatprep.subr.bf16.mxu0 0
    %296 = vmatpush2.bf16.msra.mxu0 0
    %297 = vmatprep.subr.bf16.mxu0 0
    %298 = vmatpush2.bf16.msra.mxu0 0
    %299 = vmatprep.subr.bf16.mxu0 0
    %300 = vmatpush2.bf16.msra.mxu0 0
    %301 = vmatprep.subr.bf16.mxu0 0
    %302 = vmatpush2.bf16.msra.mxu0 0
    %303 = vmatprep.subr.bf16.mxu0 0
    %304 = vmatpush2.bf16.msra.mxu0 0
    %305 = vmatprep.subr.bf16.mxu0 0
    %306 = vmatpush2.bf16.msra.mxu0 0
    %307 = vmatprep.mubr.bf16.mxu0 0
    %308 = vmatmul.mubr.bf16.gmra.mxu0 %v203
    %v309 = vpop.f32.mrf.mxu0
    %v310 = vadd.f32 %v225, %v309
    %v311 = vpop.f32.mrf.mxu0
    %v312 = vpop.f32.mrf.mxu0
    %v313 = vadd.f32 %v225, %v312
    %v314 = vpop.f32.mrf.mxu0
    %315 = vdwg.mxu0
    %v316 = vmul.f32 %v310, 0.5
    %v317 = vmul.f32 %v313, 0.5
    %v318 = vmul.f32 %v310, 0.70710677
    %v319 = vmul.f32 %v313, 0.70710677
    %v320 = verf.f32.pop %v318
    %v321 = verf.f32.pop %v319
    %v322 = vadd.f32 %v320, 1.0
    %v323 = vadd.f32 %v321, 1.0
    %v324 = vmul.f32 %v316, %v322
    %v325 = vmul.f32 %v317, %v323
    %v326 = vpack.c.bf16 %v325, %v324
    %v327 = vld [vmem:[#allocation8] sm:$0xf]
    %v328 = vld [vmem:[#allocation8 + $0x4] sm:$0xf]
    %v329 = vld [vmem:[#allocation8 + $0x8] sm:$0xf]
    %v330 = vld [vmem:[#allocation8 + $0xc] sm:$0xf]
    %v331 = vld [vmem:[#allocation8 + $0x10] sm:$0xf]
    %v332 = vld [vmem:[#allocation8 + $0x14] sm:$0xf]
    %v333 = vld [vmem:[#allocation8 + $0x18] sm:$0xf]
    %v334 = vld [vmem:[#allocation8 + $0x1c] sm:$0xf]
    %v335 = vld [vmem:[#allocation8 + $0x20] sm:$0xf]
    %v336 = vld [vmem:[#allocation8 + $0x24] sm:$0xf]
    %v337 = vld [vmem:[#allocation8 + $0x28] sm:$0xf]
    %v338 = vld [vmem:[#allocation8 + $0x2c] sm:$0xf]
    %v339 = vld [vmem:[#allocation8 + $0x30] sm:$0xf]
    %v340 = vld [vmem:[#allocation8 + $0x34] sm:$0xf]
    %v341 = vld [vmem:[#allocation8 + $0x38] sm:$0xf]
    %v342 = vld [vmem:[#allocation8 + $0x3c] sm:$0xf]
    %v343 = vld [vmem:[%s6] sm:$0x1]
    %v345 = vlaneseq
    %v346 = vshrl.u32 %v345, 7
    %v347 = vsub.s32 0, %v346
    %v348 = vrot.slane %v343, %v347
    %v366 = vunpack.c.l.b16 %v327
    %v367 = vunpack.c.l.b16 %v328
    %v368 = vunpack.c.l.b16 %v329
    %v369 = vunpack.c.l.b16 %v330
    %v370 = vunpack.c.l.b16 %v331
    %v371 = vunpack.c.l.b16 %v332
    %v372 = vunpack.c.l.b16 %v333
    %v373 = vunpack.c.l.b16 %v334
    %v374 = vunpack.c.l.b16 %v335
    %v375 = vunpack.c.l.b16 %v336
    %v376 = vunpack.c.l.b16 %v337
    %v377 = vunpack.c.l.b16 %v338
    %v378 = vunpack.c.l.b16 %v339
    %v379 = vunpack.c.l.b16 %v340
    %v380 = vunpack.c.l.b16 %v341
    %v381 = vunpack.c.l.b16 %v342
    %v382 = vpack.c.b16 %v367, %v366
    %v383 = vpack.c.b16 %v369, %v368
    %v384 = vpack.c.b16 %v371, %v370
    %v385 = vpack.c.b16 %v373, %v372
    %v386 = vpack.c.b16 %v375, %v374
    %v387 = vpack.c.b16 %v377, %v376
    %v388 = vpack.c.b16 %v379, %v378
    %v389 = vpack.c.b16 %v381, %v380
    %398 = vmatprep.subr.bf16.mxu0 0
    %399 = vmatpush1.bf16.msra.mxu0 %v389
    %400 = vmatprep.subr.bf16.mxu0 0
    %401 = vmatpush1.bf16.msra.mxu0 %v388
    %402 = vmatprep.subr.bf16.mxu0 0
    %403 = vmatpush1.bf16.msra.mxu0 %v387
    %404 = vmatprep.subr.bf16.mxu0 0
    %405 = vmatpush1.bf16.msra.mxu0 %v386
    %406 = vmatprep.subr.bf16.mxu0 0
    %407 = vmatpush1.bf16.msra.mxu0 %v385
    %408 = vmatprep.subr.bf16.mxu0 0
    %409 = vmatpush1.bf16.msra.mxu0 %v384
    %410 = vmatprep.subr.bf16.mxu0 0
    %411 = vmatpush1.bf16.msra.mxu0 %v383
    %412 = vmatprep.subr.bf16.mxu0 0
    %413 = vmatpush1.bf16.msra.mxu0 %v382
    %414 = vmatprep.subr.bf16.mxu0 0
    %415 = vmatpush2.bf16.msra.mxu0 0
    %416 = vmatprep.subr.bf16.mxu0 0
    %417 = vmatpush2.bf16.msra.mxu0 0
    %418 = vmatprep.subr.bf16.mxu0 0
    %419 = vmatpush2.bf16.msra.mxu0 0
    %420 = vmatprep.subr.bf16.mxu0 0
    %421 = vmatpush2.bf16.msra.mxu0 0
    %422 = vmatprep.subr.bf16.mxu0 0
    %423 = vmatpush2.bf16.msra.mxu0 0
    %424 = vmatprep.subr.bf16.mxu0 0
    %425 = vmatpush2.bf16.msra.mxu0 0
    %426 = vmatprep.subr.bf16.mxu0 0
    %427 = vmatpush2.bf16.msra.mxu0 0
    %428 = vmatprep.subr.bf16.mxu0 0
    %429 = vmatpush2.bf16.msra.mxu0 0
    %430 = vmatprep.mubr.bf16.mxu0 0
    %431 = vmatmul.mubr.bf16.gmra.mxu0 %v326
    %v432 = vpop.f32.mrf.mxu0
    %v433 = vadd.f32 %v348, %v432
    %v434 = vpop.f32.mrf.mxu0
    %v435 = vpop.f32.mrf.mxu0
    %v436 = vadd.f32 %v348, %v435
    %v437 = vpop.f32.mrf.mxu0
    %438 = vdwg.mxu0
    %439 = vst [vmem:[#allocation10] sm:$0xff] %v433
    %440 = vst [vmem:[#allocation10 + $0x8] sm:$0xff] %v436
    // Predicated region
    $region46: #{tpu_custom_call.1} parent=1 // pred_check
      _
    $region47: #{tpu_custom_call.1} parent=1 // pred_check_branch
      %442 = sbr.rel (0) target = $region49
    $region48: #{tpu_custom_call.1} parent=1 // pred_region
      %s444 = ssub.s32 256, 256
      %445 = vsyncadd [#allocation4], %s444
      %s446 = sshll.u32 [#allocation10], 4
      %s447 = int_to_ptr.vmem [resolvable:$true] %s446
      %452 = dma.vmem_to_hbm [thread:$0]  %s447, 256, %s7, [#allocation4], 128, 128, 8
    $region49: #{tpu_custom_call.1} parent=1 // pred_fallthru
      _
    // Predicated region
    $region50: #{tpu_custom_call.1} parent=1 // pred_check
      _
    $region51: #{tpu_custom_call.1} parent=1 // pred_check_branch
      %454 = sbr.rel (0) target = $region53
    $region52: #{tpu_custom_call.1} parent=1 // pred_region
      %455 = dma.done [#allocation4], 256
    $region53: #{tpu_custom_call.1} parent=1 // pred_fallthru
      _
    %456 = vsyncpa [#allocation3], 1
    %457 = vsyncpa [#allocation6], 1
    %458 = vsyncpa [#allocation9], 1
    %459 = vsyncpa [#allocation4], 1

</llo_original>
